<compile_context>
chip_gen: v6e
topology: v6e:2x2x1
jax: 0.10.0
libtpu: 0.0.40
codegen_flags: <defaults>
</compile_context>

<pallas_src>
import functools

import jax
import jax.numpy as jnp
from jax.experimental import pallas as pl
from jax.experimental.pallas import tpu as pltpu


def _round_up(x, m):
    return ((x + m - 1) // m) * m


def _mlp_kernel(x_ref, w1_ref, b1_ref, w2_ref, b2_ref, w3_ref, b3_ref, out_ref):
    # fc1 + ReLU
    x = x_ref[...]
    h1 = jnp.dot(x, w1_ref[...], preferred_element_type=jnp.float32) + b1_ref[...]
    h1 = jnp.maximum(h1, 0.0)
    # fc2 + ReLU
    h2 = jnp.dot(h1, w2_ref[...], preferred_element_type=jnp.float32) + b2_ref[...]
    h2 = jnp.maximum(h2, 0.0)
    # pi head + numerically stable softmax along dim=-1 (exact normalization).
    logits = jnp.dot(h2, w3_ref[...], preferred_element_type=jnp.float32) + b3_ref[...]
    logits = logits - jnp.max(logits, axis=-1, keepdims=True)
    e = jnp.exp(logits)
    denom = jnp.sum(e, axis=-1, keepdims=True)
    out_ref[...] = (e / denom).astype(out_ref.dtype)


def _pick_block_m(batch, block_m_cap):
    """Batch tile: multiple of 8 sublanes; >=4 tiles when batch is large (v7x megacore),
    but never below 2048 rows per tile (amortize ~0.35us grid-step overhead), and never
    above the padded batch or the user cap."""
    bm = _round_up(pl.cdiv(batch, 4), 8)
    bm = max(bm, 2048)
    bm = min(bm, block_m_cap, _round_up(batch, 8))
    return max(bm, 8)


@functools.partial(jax.jit, static_argnames=("block_m",))
def mlp_forward(obs, params, block_m=8192):
    """obs: (B, obs_dim) float32. params: dict of w1,b1,w2,b2,w3,b3 (W as (in, out))."""
    w1, b1 = params["w1"], params["b1"]
    w2, b2 = params["w2"], params["b2"]
    w3, b3 = params["w3"], params["b3"]

    B, obs_dim = obs.shape
    d1 = w1.shape[1]
    d2 = w2.shape[1]
    n_actions = w3.shape[1]

    bm = _pick_block_m(B, block_m)
    grid = (pl.cdiv(B, bm),)

    param_bytes = sum(int(p.size) * p.dtype.itemsize for p in (w1, b1, w2, b2, w3, b3))
    cost = pl.CostEstimate(
        flops=2 * B * (obs_dim * d1 + d1 * d2 + d2 * n_actions),
        transcendentals=B * n_actions,
        bytes_accessed=B * (obs_dim + n_actions) * 4 + param_bytes,
    )

    # Weights/biases: one block covering the whole array, constant index_map -> stays
    # resident in VMEM across all batch tiles.
    const = lambda arr: pl.BlockSpec(arr.shape, lambda i: (0, 0))

    out = pl.pallas_call(
        _mlp_kernel,
        out_shape=jax.ShapeDtypeStruct((B, n_actions), jnp.float32),
        grid_spec=pltpu.PrefetchScalarGridSpec(
            num_scalar_prefetch=0,
            grid=grid,
            in_specs=[
                pl.BlockSpec((bm, obs_dim), lambda i: (i, 0)),
                const(w1), const(b1),
                const(w2), const(b2),
                const(w3), const(b3),
            ],
            out_specs=pl.BlockSpec((bm, n_actions), lambda i: (i, 0)),
        ),
        compiler_params=pltpu.CompilerParams(
            dimension_semantics=("parallel",),  # megacore sharding on v7x; no-op v5e/v6e
        ),
        cost_estimate=cost,
    )(obs, w1, b1, w2, b2, w3, b3)

    return out


def init_params(key, obs_dim, fc1_dims=64, fc2_dims=32, n_actions=4):
    """Deterministic init mimicking nn.Linear's uniform(-1/sqrt(fan_in), 1/sqrt(fan_in))."""
    ks = jax.random.split(key, 6)

    def linear(kw, kb, fan_in, fan_out):
        bound = 1.0 / jnp.sqrt(jnp.float32(fan_in))
        w = jax.random.uniform(kw, (fan_in, fan_out), jnp.float32, -bound, bound)
        b = jax.random.uniform(kb, (1, fan_out), jnp.float32, -bound, bound)
        return w, b

    w1, b1 = linear(ks[0], ks[1], obs_dim, fc1_dims)
    w2, b2 = linear(ks[2], ks[3], fc1_dims, fc2_dims)
    w3, b3 = linear(ks[4], ks[5], fc2_dims, n_actions)
    return {"w1": w1, "b1": b1, "w2": w2, "b2": b2, "w3": w3, "b3": b3}


def _reference(obs, params):
    h1 = jnp.maximum(obs @ params["w1"] + params["b1"], 0.0)
    h2 = jnp.maximum(h1 @ params["w2"] + params["b2"], 0.0)
    return jax.nn.softmax(h2 @ params["w3"] + params["b3"], axis=-1)


if __name__ == "__main__":
    key = jax.random.PRNGKey(0)
    k_obs, k_par = jax.random.split(key)

    batch, obs_dim, n_actions = 2, 8, 4
    obs = jax.random.normal(k_obs, (batch, obs_dim), jnp.float32)
    params = init_params(k_par, obs_dim, fc1_dims=64, fc2_dims=32, n_actions=n_actions)

    pi = mlp_forward(obs, params)
    jax.block_until_ready(pi)

    # sanity: shape and exact softmax normalization
    assert pi.shape == (batch, n_actions)
    assert jnp.allclose(jnp.sum(pi, axis=-1), 1.0, atol=1e-3)

    # reference check in plain JAX (tolerance absorbs MXU vs. XLA matmul precision)
    ref = _reference(obs, params)
    assert jnp.allclose(pi, ref, atol=2e-3)

    # larger, non-multiple-of-tile batch -> exercises partial-tile boundary masking
    big_obs = jax.random.normal(jax.random.PRNGKey(1), (1000, obs_dim), jnp.float32)
    big_pi = mlp_forward(big_obs, params, block_m=256)  # 4 tiles, last one partial
    jax.block_until_ready(big_pi)
    refb = _reference(big_obs, params)
    assert big_pi.shape == (1000, n_actions)
    assert jnp.allclose(jnp.sum(big_pi, axis=-1), 1.0, atol=1e-3)
    assert jnp.allclose(big_pi, refb, atol=2e-3)

    print("KERNEL_OK")
</pallas_src>

<mosaic_0001>
module attributes {stable_mosaic.version = 11 : i64} {
  func.func @_mlp_kernel(%arg0: i32, %arg1: memref<8x8xf32, #tpu.memory_space<vmem>>, %arg2: memref<8x64xf32, #tpu.memory_space<vmem>>, %arg3: memref<1x64xf32, #tpu.memory_space<vmem>>, %arg4: memref<64x32xf32, #tpu.memory_space<vmem>>, %arg5: memref<1x32xf32, #tpu.memory_space<vmem>>, %arg6: memref<32x4xf32, #tpu.memory_space<vmem>>, %arg7: memref<1x4xf32, #tpu.memory_space<vmem>>, %arg8: memref<8x4xf32, #tpu.memory_space<vmem>>) attributes {dimension_semantics = [#tpu.dimension_semantics<parallel>], iteration_bounds = array<i64: 1>, scalar_prefetch = 0 : i64, scratch_operands = 0 : i64, tpu.core_type = #tpu.core_type<tc>, window_params = [{transform_indices = @transform_0, window_bounds = array<i64: 8, 8>}, {pipeline_mode = #tpu.pipeline_mode<synchronous>, transform_indices = @transform_1, window_bounds = array<i64: 8, 64>}, {pipeline_mode = #tpu.pipeline_mode<synchronous>, transform_indices = @transform_2, window_bounds = array<i64: 1, 64>}, {pipeline_mode = #tpu.pipeline_mode<synchronous>, transform_indices = @transform_3, window_bounds = array<i64: 64, 32>}, {pipeline_mode = #tpu.pipeline_mode<synchronous>, transform_indices = @transform_4, window_bounds = array<i64: 1, 32>}, {pipeline_mode = #tpu.pipeline_mode<synchronous>, transform_indices = @transform_5, window_bounds = array<i64: 32, 4>}, {pipeline_mode = #tpu.pipeline_mode<synchronous>, transform_indices = @transform_6, window_bounds = array<i64: 1, 4>}, {transform_indices = @transform_7, window_bounds = array<i64: 8, 4>}]} {
    %c0 = arith.constant 0 : index
    %c0_0 = arith.constant 0 : index
    %0 = vector.load %arg1[%c0, %c0_0] : memref<8x8xf32, #tpu.memory_space<vmem>>, vector<8x8xf32>
    %c0_1 = arith.constant 0 : index
    %c0_2 = arith.constant 0 : index
    %1 = vector.load %arg2[%c0_1, %c0_2] : memref<8x64xf32, #tpu.memory_space<vmem>>, vector<8x64xf32>
    %cst = arith.constant dense<0.000000e+00> : vector<8x64xf32>
    %2 = tpu.matmul %0, %1, %cst {dimension_numbers = #tpu.dot_dimension_numbers<[1], [0], [0], [1], [0, 0, 1, 1], [], []>} : vector<8x8xf32>, vector<8x64xf32>, vector<8x64xf32> -> vector<8x64xf32>
    %c0_3 = arith.constant 0 : index
    %c0_4 = arith.constant 0 : index
    %3 = vector.load %arg3[%c0_3, %c0_4] : memref<1x64xf32, #tpu.memory_space<vmem>>, vector<1x64xf32>
    %4 = vector.broadcast %3 : vector<1x64xf32> to vector<8x64xf32>
    %5 = arith.addf %2, %4 : vector<8x64xf32>
    %cst_5 = arith.constant 0.000000e+00 : f32
    %6 = vector.broadcast %cst_5 : f32 to vector<8x64xf32>
    %7 = arith.maximumf %5, %6 : vector<8x64xf32>
    %c0_6 = arith.constant 0 : index
    %c0_7 = arith.constant 0 : index
    %8 = vector.load %arg4[%c0_6, %c0_7] : memref<64x32xf32, #tpu.memory_space<vmem>>, vector<64x32xf32>
    %cst_8 = arith.constant dense<0.000000e+00> : vector<8x32xf32>
    %9 = tpu.matmul %7, %8, %cst_8 {dimension_numbers = #tpu.dot_dimension_numbers<[1], [0], [0], [1], [0, 0, 1, 1], [], []>} : vector<8x64xf32>, vector<64x32xf32>, vector<8x32xf32> -> vector<8x32xf32>
    %c0_9 = arith.constant 0 : index
    %c0_10 = arith.constant 0 : index
    %10 = vector.load %arg5[%c0_9, %c0_10] : memref<1x32xf32, #tpu.memory_space<vmem>>, vector<1x32xf32>
    %11 = vector.broadcast %10 : vector<1x32xf32> to vector<8x32xf32>
    %12 = arith.addf %9, %11 : vector<8x32xf32>
    %cst_11 = arith.constant 0.000000e+00 : f32
    %13 = vector.broadcast %cst_11 : f32 to vector<8x32xf32>
    %14 = arith.maximumf %12, %13 : vector<8x32xf32>
    %c0_12 = arith.constant 0 : index
    %c0_13 = arith.constant 0 : index
    %15 = vector.load %arg6[%c0_12, %c0_13] : memref<32x4xf32, #tpu.memory_space<vmem>>, vector<32x4xf32>
    %cst_14 = arith.constant dense<0.000000e+00> : vector<8x4xf32>
    %16 = tpu.matmul %14, %15, %cst_14 {dimension_numbers = #tpu.dot_dimension_numbers<[1], [0], [0], [1], [0, 0, 1, 1], [], []>} : vector<8x32xf32>, vector<32x4xf32>, vector<8x4xf32> -> vector<8x4xf32>
    %c0_15 = arith.constant 0 : index
    %c0_16 = arith.constant 0 : index
    %17 = vector.load %arg7[%c0_15, %c0_16] : memref<1x4xf32, #tpu.memory_space<vmem>>, vector<1x4xf32>
    %18 = vector.broadcast %17 : vector<1x4xf32> to vector<8x4xf32>
    %19 = arith.addf %16, %18 : vector<8x4xf32>
    %cst_17 = arith.constant dense<0xFF800000> : vector<8xf32>
    %20 = vector.multi_reduction <maximumf>, %19, %cst_17 [1] : vector<8x4xf32> to vector<8xf32>
    %21 = vector.shape_cast %20 : vector<8xf32> to vector<8x1xf32>
    %22 = vector.broadcast %21 : vector<8x1xf32> to vector<8x4xf32>
    %23 = arith.subf %19, %22 : vector<8x4xf32>
    %24 = math.exp %23 : vector<8x4xf32>
    %cst_18 = arith.constant dense<0.000000e+00> : vector<8xf32>
    %25 = vector.multi_reduction <add>, %24, %cst_18 [1] : vector<8x4xf32> to vector<8xf32>
    %26 = vector.shape_cast %25 : vector<8xf32> to vector<8x1xf32>
    %27 = vector.broadcast %26 : vector<8x1xf32> to vector<8x4xf32>
    %28 = arith.divf %24, %27 : vector<8x4xf32>
    %c0_19 = arith.constant 0 : index
    %c0_20 = arith.constant 0 : index
    %29 = vector.load %arg8[%c0_19, %c0_20] : memref<8x4xf32, #tpu.memory_space<vmem>>, vector<8x4xf32>
    tpu.vector_store %arg8[%c0_19, %c0_20], %28 {strides = array<i32>} : memref<8x4xf32, #tpu.memory_space<vmem>>, vector<8x4xf32>,
    return
  }
  func.func @transform_0(%arg0: i32) -> (i32, i32) {
    %c0_i32 = arith.constant 0 : i32
    %c0_i32_0 = arith.constant 0 : i32
    return %arg0, %c0_i32 : i32, i32
  }
  func.func @transform_1(%arg0: i32) -> (i32, i32) {
    %c0_i32 = arith.constant 0 : i32
    %c0_i32_0 = arith.constant 0 : i32
    %c0_i32_1 = arith.constant 0 : i32
    return %c0_i32, %c0_i32_0 : i32, i32
  }
  func.func @transform_2(%arg0: i32) -> (i32, i32) {
    %c0_i32 = arith.constant 0 : i32
    %c0_i32_0 = arith.constant 0 : i32
    %c0_i32_1 = arith.constant 0 : i32
    return %c0_i32, %c0_i32_0 : i32, i32
  }
  func.func @transform_3(%arg0: i32) -> (i32, i32) {
    %c0_i32 = arith.constant 0 : i32
    %c0_i32_0 = arith.constant 0 : i32
    %c0_i32_1 = arith.constant 0 : i32
    return %c0_i32, %c0_i32_0 : i32, i32
  }
  func.func @transform_4(%arg0: i32) -> (i32, i32) {
    %c0_i32 = arith.constant 0 : i32
    %c0_i32_0 = arith.constant 0 : i32
    %c0_i32_1 = arith.constant 0 : i32
    return %c0_i32, %c0_i32_0 : i32, i32
  }
  func.func @transform_5(%arg0: i32) -> (i32, i32) {
    %c0_i32 = arith.constant 0 : i32
    %c0_i32_0 = arith.constant 0 : i32
    %c0_i32_1 = arith.constant 0 : i32
    return %c0_i32, %c0_i32_0 : i32, i32
  }
  func.func @transform_6(%arg0: i32) -> (i32, i32) {
    %c0_i32 = arith.constant 0 : i32
    %c0_i32_0 = arith.constant 0 : i32
    %c0_i32_1 = arith.constant 0 : i32
    return %c0_i32, %c0_i32_0 : i32, i32
  }
  func.func @transform_7(%arg0: i32) -> (i32, i32) {
    %c0_i32 = arith.constant 0 : i32
    %c0_i32_0 = arith.constant 0 : i32
    return %arg0, %c0_i32 : i32, i32
  }
}

</mosaic_0001>

<llo_original>
// kernel: mlp_forward.1
$region0: #{mlp_forward.1}
  #allocation0 [shape = 'u32[]', space=smem, size = 0x4, offset = 0x4, fixed_abs, tag = 'smem constant byte address 0x4 - core index']
  #allocation1 [shape = 'u32[144,128]{1,0:T(1,128)}', space=vmem, size = 0x12000, scoped, tag = 'internal scratch']
  %s0 = inlined_call_operand.vmem [shape: f32[2,8], index: 0, kind: input, shape index: {}]
  %s1 = inlined_call_operand.vmem [shape: f32[8,64], index: 1, kind: input, shape index: {}]
  %s2 = inlined_call_operand.vmem [shape: f32[1,64], index: 2, kind: input, shape index: {}]
  %s3 = inlined_call_operand.vmem [shape: f32[64,32], index: 3, kind: input, shape index: {}]
  %s4 = inlined_call_operand.vmem [shape: f32[1,32], index: 4, kind: input, shape index: {}]
  %s5 = inlined_call_operand.vmem [shape: f32[32,4], index: 5, kind: input, shape index: {}]
  %s6 = inlined_call_operand.vmem [shape: f32[1,4], index: 6, kind: input, shape index: {}]
  %s7 = inlined_call_operand.hbm [shape: f32[2,4], index: 7, kind: output, shape index: {}]
  %s8 = sld [smem:[#allocation0]]
  $region38: #{mlp_forward.1} parent=0
    _
  %s10 = ssub.s32 1, %s8
  %s11 = scalar_select 0, %s10, %s8
  $region1: #{mlp_forward.1} parent=0
    #allocation2 [shape = 'u8[4096]{0}', space=vmem, size = 0x1000, scoped, tag = 'output window, operand 0, single buffered']
    #allocation3 [shape = 's32[1]{0}', space=sflag, size = 0x4, scoped, tag = 'scoped memory for mlp_forward.1']
    %12 = vsyncpa [#allocation3], 0
    // Predicated region
    $region2: #{mlp_forward.1} parent=1 // pred_check
      _
    $region3: #{mlp_forward.1} parent=1 // pred_check_branch
      %14 = sbr.rel (0) target = $region5
    $region4: #{mlp_forward.1} parent=1 // pred_region
      _
    $region5: #{mlp_forward.1} parent=1 // pred_fallthru
      _
    // Predicated region
    $region6: #{mlp_forward.1} parent=1 // pred_check
      _
    $region7: #{mlp_forward.1} parent=1 // pred_check_branch
      %16 = sbr.rel (0) target = $region9
    $region8: #{mlp_forward.1} parent=1 // pred_region
      _
    $region9: #{mlp_forward.1} parent=1 // pred_fallthru
      _
    // Predicated region
    $region10: #{mlp_forward.1} parent=1 // pred_check
      _
    $region11: #{mlp_forward.1} parent=1 // pred_check_branch
      %18 = sbr.rel (0) target = $region13
    $region12: #{mlp_forward.1} parent=1 // pred_region
      _
    $region13: #{mlp_forward.1} parent=1 // pred_fallthru
      _
    // Predicated region
    $region14: #{mlp_forward.1} parent=1 // pred_check
      _
    $region15: #{mlp_forward.1} parent=1 // pred_check_branch
      %20 = sbr.rel (0) target = $region17
    $region16: #{mlp_forward.1} parent=1 // pred_region
      _
    $region17: #{mlp_forward.1} parent=1 // pred_fallthru
      _
    // Predicated region
    $region18: #{mlp_forward.1} parent=1 // pred_check
      _
    $region19: #{mlp_forward.1} parent=1 // pred_check_branch
      %22 = sbr.rel (0) target = $region21
    $region20: #{mlp_forward.1} parent=1 // pred_region
      _
    $region21: #{mlp_forward.1} parent=1 // pred_fallthru
      _
    // Predicated region
    $region22: #{mlp_forward.1} parent=1 // pred_check
      _
    $region23: #{mlp_forward.1} parent=1 // pred_check_branch
      %24 = sbr.rel (0) target = $region25
    $region24: #{mlp_forward.1} parent=1 // pred_region
      _
    $region25: #{mlp_forward.1} parent=1 // pred_fallthru
      _
    // Predicated region
    $region26: #{mlp_forward.1} parent=1 // pred_check
      _
    $region27: #{mlp_forward.1} parent=1 // pred_check_branch
      %26 = sbr.rel (0) target = $region29
    $region28: #{mlp_forward.1} parent=1 // pred_region
      _
    $region29: #{mlp_forward.1} parent=1 // pred_fallthru
      _
    %v27 = vld [vmem:[%s0] sm:$0xff]
    %v28 = vld [vmem:[%s1] sm:$0xff]
    %v29 = vld [vmem:[%s2] sm:$0x1]
    %v31 = vlaneseq
    %v32 = vshrl.u32 %v31, 7
    %v33 = vsub.s32 0, %v32
    %v34 = vrot.slane %v29, %v33
    %vm36 = vcmask 64512
    %v38 = vsel %vm36, %v27, 0
    %40 = vmatprep.subr.mxu0 0.0
    %41 = vmatpush1.msra.mxu0 0.0
    %42 = vmatprep.subr.mxu0 0.0
    %43 = vmatpush1.msra.mxu0 0.0
    %44 = vmatprep.subr.mxu0 0.0
    %45 = vmatpush1.msra.mxu0 0.0
    %46 = vmatprep.subr.mxu0 0.0
    %47 = vmatpush1.msra.mxu0 0.0
    %48 = vmatprep.subr.mxu0 0.0
    %49 = vmatpush1.msra.mxu0 0.0
    %50 = vmatprep.subr.mxu0 0.0
    %51 = vmatpush1.msra.mxu0 0.0
    %52 = vmatprep.subr.mxu0 0.0
    %53 = vmatpush1.msra.mxu0 0.0
    %54 = vmatprep.subr.mxu0 0.0
    %55 = vmatpush1.msra.mxu0 0.0
    %56 = vmatprep.subr.mxu0 0.0
    %57 = vmatpush1.msra.mxu0 0.0
    %58 = vmatprep.subr.mxu0 0.0
    %59 = vmatpush1.msra.mxu0 0.0
    %60 = vmatprep.subr.mxu0 0.0
    %61 = vmatpush1.msra.mxu0 0.0
    %62 = vmatprep.subr.mxu0 0.0
    %63 = vmatpush1.msra.mxu0 0.0
    %64 = vmatprep.subr.mxu0 0.0
    %65 = vmatpush1.msra.mxu0 0.0
    %66 = vmatprep.subr.mxu0 0.0
    %67 = vmatpush1.msra.mxu0 0.0
    %68 = vmatprep.subr.mxu0 0.0
    %69 = vmatpush1.msra.mxu0 0.0
    %70 = vmatprep.subr.mxu0 0.0
    %71 = vmatpush1.msra.mxu0 %v28
    %72 = vmatprep.subr.mxu0 0.0
    %73 = vmatpush2.msra.mxu0 0.0
    %74 = vmatprep.subr.mxu0 0.0
    %75 = vmatpush2.msra.mxu0 0.0
    %76 = vmatprep.subr.mxu0 0.0
    %77 = vmatpush2.msra.mxu0 0.0
    %78 = vmatprep.subr.mxu0 0.0
    %79 = vmatpush2.msra.mxu0 0.0
    %80 = vmatprep.subr.mxu0 0.0
    %81 = vmatpush2.msra.mxu0 0.0
    %82 = vmatprep.subr.mxu0 0.0
    %83 = vmatpush2.msra.mxu0 0.0
    %84 = vmatprep.subr.mxu0 0.0
    %85 = vmatpush2.msra.mxu0 0.0
    %86 = vmatprep.subr.mxu0 0.0
    %87 = vmatpush2.msra.mxu0 0.0
    %88 = vmatprep.subr.mxu0 0.0
    %89 = vmatpush2.msra.mxu0 0.0
    %90 = vmatprep.subr.mxu0 0.0
    %91 = vmatpush2.msra.mxu0 0.0
    %92 = vmatprep.subr.mxu0 0.0
    %93 = vmatpush2.msra.mxu0 0.0
    %94 = vmatprep.subr.mxu0 0.0
    %95 = vmatpush2.msra.mxu0 0.0
    %96 = vmatprep.subr.mxu0 0.0
    %97 = vmatpush2.msra.mxu0 0.0
    %98 = vmatprep.subr.mxu0 0.0
    %99 = vmatpush2.msra.mxu0 0.0
    %100 = vmatprep.subr.mxu0 0.0
    %101 = vmatpush2.msra.mxu0 0.0
    %102 = vmatprep.subr.mxu0 0.0
    %103 = vmatpush2.msra.mxu0 0.0
    %104 = vmatprep.mubr.f32.mxu0 0.0
    %105 = vmatmul.mubr.f32.gmra.mxu0 %v38
    %v106 = vpop.f32.mrf.mxu0
    %v107 = vadd.f32 %v34, %v106
    %v108 = vpop.f32.mrf.mxu0
    %109 = vdwg.mxu0
    %v110 = vmax.f32 %v107, 0.0
    %v111 = vld [vmem:[%s3] sm:$0xff]
    %v112 = vld [vmem:[%s3 + $0x8] sm:$0xff]
    %v113 = vld [vmem:[%s3 + $0x10] sm:$0xff]
    %v114 = vld [vmem:[%s3 + $0x18] sm:$0xff]
    %v115 = vld [vmem:[%s3 + $0x20] sm:$0xff]
    %v116 = vld [vmem:[%s3 + $0x28] sm:$0xff]
    %v117 = vld [vmem:[%s3 + $0x30] sm:$0xff]
    %v118 = vld [vmem:[%s3 + $0x38] sm:$0xff]
    %v119 = vld [vmem:[%s4] sm:$0x1]
    %v121 = vlaneseq
    %v122 = vshrl.u32 %v121, 7
    %v123 = vsub.s32 0, %v122
    %v124 = vrot.slane %v119, %v123
    %vm126 = vcmask 523264
    %v128 = vsel %vm126, %v110, 0
    %130 = vmatprep.subr.mxu0 0.0
    %131 = vmatpush1.msra.mxu0 0.0
    %132 = vmatprep.subr.mxu0 0.0
    %133 = vmatpush1.msra.mxu0 0.0
    %134 = vmatprep.subr.mxu0 0.0
    %135 = vmatpush1.msra.mxu0 0.0
    %136 = vmatprep.subr.mxu0 0.0
    %137 = vmatpush1.msra.mxu0 0.0
    %138 = vmatprep.subr.mxu0 0.0
    %139 = vmatpush1.msra.mxu0 0.0
    %140 = vmatprep.subr.mxu0 0.0
    %141 = vmatpush1.msra.mxu0 0.0
    %142 = vmatprep.subr.mxu0 0.0
    %143 = vmatpush1.msra.mxu0 0.0
    %144 = vmatprep.subr.mxu0 0.0
    %145 = vmatpush1.msra.mxu0 0.0
    %146 = vmatprep.subr.mxu0 0.0
    %147 = vmatpush1.msra.mxu0 %v118
    %148 = vmatprep.subr.mxu0 0.0
    %149 = vmatpush1.msra.mxu0 %v117
    %150 = vmatprep.subr.mxu0 0.0
    %151 = vmatpush1.msra.mxu0 %v116
    %152 = vmatprep.subr.mxu0 0.0
    %153 = vmatpush1.msra.mxu0 %v115
    %154 = vmatprep.subr.mxu0 0.0
    %155 = vmatpush1.msra.mxu0 %v114
    %156 = vmatprep.subr.mxu0 0.0
    %157 = vmatpush1.msra.mxu0 %v113
    %158 = vmatprep.subr.mxu0 0.0
    %159 = vmatpush1.msra.mxu0 %v112
    %160 = vmatprep.subr.mxu0 0.0
    %161 = vmatpush1.msra.mxu0 %v111
    %162 = vmatprep.subr.mxu0 0.0
    %163 = vmatpush2.msra.mxu0 0.0
    %164 = vmatprep.subr.mxu0 0.0
    %165 = vmatpush2.msra.mxu0 0.0
    %166 = vmatprep.subr.mxu0 0.0
    %167 = vmatpush2.msra.mxu0 0.0
    %168 = vmatprep.subr.mxu0 0.0
    %169 = vmatpush2.msra.mxu0 0.0
    %170 = vmatprep.subr.mxu0 0.0
    %171 = vmatpush2.msra.mxu0 0.0
    %172 = vmatprep.subr.mxu0 0.0
    %173 = vmatpush2.msra.mxu0 0.0
    %174 = vmatprep.subr.mxu0 0.0
    %175 = vmatpush2.msra.mxu0 0.0
    %176 = vmatprep.subr.mxu0 0.0
    %177 = vmatpush2.msra.mxu0 0.0
    %178 = vmatprep.subr.mxu0 0.0
    %179 = vmatpush2.msra.mxu0 0.0
    %180 = vmatprep.subr.mxu0 0.0
    %181 = vmatpush2.msra.mxu0 0.0
    %182 = vmatprep.subr.mxu0 0.0
    %183 = vmatpush2.msra.mxu0 0.0
    %184 = vmatprep.subr.mxu0 0.0
    %185 = vmatpush2.msra.mxu0 0.0
    %186 = vmatprep.subr.mxu0 0.0
    %187 = vmatpush2.msra.mxu0 0.0
    %188 = vmatprep.subr.mxu0 0.0
    %189 = vmatpush2.msra.mxu0 0.0
    %190 = vmatprep.subr.mxu0 0.0
    %191 = vmatpush2.msra.mxu0 0.0
    %192 = vmatprep.subr.mxu0 0.0
    %193 = vmatpush2.msra.mxu0 0.0
    %194 = vmatprep.mubr.f32.mxu0 0.0
    %195 = vmatmul.mubr.f32.gmra.mxu0 %v128
    %v196 = vpop.f32.mrf.mxu0
    %v197 = vadd.f32 %v124, %v196
    %v198 = vpop.f32.mrf.mxu0
    %199 = vdwg.mxu0
    %v200 = vmax.f32 %v197, 0.0
    %v201 = vld [vmem:[%s5] sm:$0xff]
    %v202 = vld [vmem:[%s5 + $0x8] sm:$0xff]
    %v203 = vld [vmem:[%s5 + $0x10] sm:$0xff]
    %v204 = vld [vmem:[%s5 + $0x18] sm:$0xff]
    %v205 = vld [vmem:[%s6] sm:$0x1]
    %v207 = vlaneseq
    %v208 = vshrl.u32 %v207, 7
    %v209 = vsub.s32 0, %v208
    %v210 = vrot.slane %v205, %v209
    %vm212 = vcmask 261120
    %v214 = vsel %vm212, %v200, 0
    %216 = vmatprep.subr.mxu0 0.0
    %217 = vmatpush1.msra.mxu0 0.0
    %218 = vmatprep.subr.mxu0 0.0
    %219 = vmatpush1.msra.mxu0 0.0
    %220 = vmatprep.subr.mxu0 0.0
    %221 = vmatpush1.msra.mxu0 0.0
    %222 = vmatprep.subr.mxu0 0.0
    %223 = vmatpush1.msra.mxu0 0.0
    %224 = vmatprep.subr.mxu0 0.0
    %225 = vmatpush1.msra.mxu0 0.0
    %226 = vmatprep.subr.mxu0 0.0
    %227 = vmatpush1.msra.mxu0 0.0
    %228 = vmatprep.subr.mxu0 0.0
    %229 = vmatpush1.msra.mxu0 0.0
    %230 = vmatprep.subr.mxu0 0.0
    %231 = vmatpush1.msra.mxu0 0.0
    %232 = vmatprep.subr.mxu0 0.0
    %233 = vmatpush1.msra.mxu0 0.0
    %234 = vmatprep.subr.mxu0 0.0
    %235 = vmatpush1.msra.mxu0 0.0
    %236 = vmatprep.subr.mxu0 0.0
    %237 = vmatpush1.msra.mxu0 0.0
    %238 = vmatprep.subr.mxu0 0.0
    %239 = vmatpush1.msra.mxu0 0.0
    %240 = vmatprep.subr.mxu0 0.0
    %241 = vmatpush1.msra.mxu0 %v204
    %242 = vmatprep.subr.mxu0 0.0
    %243 = vmatpush1.msra.mxu0 %v203
    %244 = vmatprep.subr.mxu0 0.0
    %245 = vmatpush1.msra.mxu0 %v202
    %246 = vmatprep.subr.mxu0 0.0
    %247 = vmatpush1.msra.mxu0 %v201
    %248 = vmatprep.subr.mxu0 0.0
    %249 = vmatpush2.msra.mxu0 0.0
    %250 = vmatprep.subr.mxu0 0.0
    %251 = vmatpush2.msra.mxu0 0.0
    %252 = vmatprep.subr.mxu0 0.0
    %253 = vmatpush2.msra.mxu0 0.0
    %254 = vmatprep.subr.mxu0 0.0
    %255 = vmatpush2.msra.mxu0 0.0
    %256 = vmatprep.subr.mxu0 0.0
    %257 = vmatpush2.msra.mxu0 0.0
    %258 = vmatprep.subr.mxu0 0.0
    %259 = vmatpush2.msra.mxu0 0.0
    %260 = vmatprep.subr.mxu0 0.0
    %261 = vmatpush2.msra.mxu0 0.0
    %262 = vmatprep.subr.mxu0 0.0
    %263 = vmatpush2.msra.mxu0 0.0
    %264 = vmatprep.subr.mxu0 0.0
    %265 = vmatpush2.msra.mxu0 0.0
    %266 = vmatprep.subr.mxu0 0.0
    %267 = vmatpush2.msra.mxu0 0.0
    %268 = vmatprep.subr.mxu0 0.0
    %269 = vmatpush2.msra.mxu0 0.0
    %270 = vmatprep.subr.mxu0 0.0
    %271 = vmatpush2.msra.mxu0 0.0
    %272 = vmatprep.subr.mxu0 0.0
    %273 = vmatpush2.msra.mxu0 0.0
    %274 = vmatprep.subr.mxu0 0.0
    %275 = vmatpush2.msra.mxu0 0.0
    %276 = vmatprep.subr.mxu0 0.0
    %277 = vmatpush2.msra.mxu0 0.0
    %278 = vmatprep.subr.mxu0 0.0
    %279 = vmatpush2.msra.mxu0 0.0
    %280 = vmatprep.mubr.f32.mxu0 0.0
    %281 = vmatmul.mubr.f32.gmra.mxu0 %v214
    %v282 = vpop.f32.mrf.mxu0
    %v283 = vadd.f32 %v210, %v282
    %v284 = vpop.f32.mrf.mxu0
    %285 = vdwg.mxu0
    %vm286 = vcmask 31744
    %v287 = vsel %vm286, %v283, -inf
    %288 = vmax.xlane.f32.xlu0 %v287
    %v289 = vpop.xlane.xlu0 %288
    %v290 = vsub.f32 %v283, %v289
    %v291 = vmul.f32 %v290, 1.442695
    %v292 = vpow.pop %v291
    %v293 = vsel %vm286, %v292, 0.0
    %294 = vadd.xlane.f32.xlu0 %v293
    %v295 = vpop.xlane.xlu0 %294
    %v296 = vrcp.pop %v295
    %v297 = vmul.f32 %v292, %v296
    %298 = vst.msk [vmem:[#allocation2] sm:$0xff] %vm286, %v297
    // Predicated region
    $region30: #{mlp_forward.1} parent=1 // pred_check
      _
    $region31: #{mlp_forward.1} parent=1 // pred_check_branch
      %300 = sbr.rel (0) target = $region33
    $region32: #{mlp_forward.1} parent=1 // pred_region
      %s302 = ssub.s32 128, 32
      %303 = vsyncadd [#allocation3], %s302
      %s304 = sshll.u32 [#allocation2], 4
      %s305 = int_to_ptr.vmem [resolvable:$true] %s304
      %310 = dma.vmem_to_hbm [thread:$0]  %s305, 32, %s7, [#allocation3], 32, 32, 2
    $region33: #{mlp_forward.1} parent=1 // pred_fallthru
      _
    // Predicated region
    $region34: #{mlp_forward.1} parent=1 // pred_check
      _
    $region35: #{mlp_forward.1} parent=1 // pred_check_branch
      %312 = sbr.rel (0) target = $region37
    $region36: #{mlp_forward.1} parent=1 // pred_region
      %313 = dma.done [#allocation3], 128
    $region37: #{mlp_forward.1} parent=1 // pred_fallthru
      _
    %314 = vsyncpa [#allocation3], 1

</llo_original>
